<compile_context>
chip_gen: v5e
topology: v5e:2x2
jax: 0.10.0
libtpu: 0.0.40
codegen_flags: <defaults>
</compile_context>

<pallas_src>
import functools

import jax
import jax.numpy as jnp
from jax import lax
from jax.experimental import pallas as pl
from jax.experimental.pallas import tpu as pltpu


# ---------------- helpers ----------------

def _round_up(x, m):
    return ((x + m - 1) // m) * m


def _im2col(xp, kh, kw, stride):
    """xp: padded NHWC input -> patches (N*OH*OW, KH*KW*C) in (kh, kw, c) order."""
    N, H, W, C = xp.shape
    oh = (H - kh) // stride + 1
    ow = (W - kw) // stride + 1
    rows = (jnp.arange(oh) * stride)[:, None] + jnp.arange(kh)[None, :]   # (oh, kh)
    cols = (jnp.arange(ow) * stride)[:, None] + jnp.arange(kw)[None, :]   # (ow, kw)
    patches = xp[:, rows[:, None, :, None], cols[None, :, None, :], :]    # (N,oh,ow,kh,kw,C)
    return patches.reshape(N * oh * ow, kh * kw * C), oh, ow


def _prep_weights(w_oihw, b, ocp, mxu_dtype):
    """PyTorch (OC,IC,KH,KW) -> (KH*KW*IC, OCP) matching (kh,kw,c) patch order; pad OC->128 lanes."""
    OC, IC, KH, KW = w_oihw.shape
    w_mat = jnp.transpose(w_oihw, (2, 3, 1, 0)).reshape(KH * KW * IC, OC)
    w_mat = jnp.pad(w_mat, ((0, 0), (0, ocp - OC))).astype(mxu_dtype)
    b2 = jnp.pad(b.reshape(1, OC), ((0, 0), (0, ocp - OC))).astype(jnp.float32)
    return w_mat, b2


# ---------------- Pallas kernels ----------------

def _conv_relu_kernel(p_ref, w_ref, b_ref, o_ref):
    # p_ref: (TM, K) bf16/f32 patches, w_ref: (K, OCP), b_ref: (1, OCP) f32.
    acc = jnp.dot(p_ref[...], w_ref[...], preferred_element_type=jnp.float32)
    acc = jnp.maximum(acc + b_ref[...], 0.0)          # bias + ReLU in f32 (VPU)
    o_ref[...] = acc.astype(o_ref.dtype)              # lane-dense (TM, 128) store


def _conv_relu_mean_kernel(p_ref, w_ref, b_ref, o_ref, *, ts, s_valid):
    # p_ref: (1, TS, K); o_ref: (1, 1, OCP) f32 accumulator, revisited along axis 1.
    s_blk = pl.program_id(1)

    @pl.when(s_blk == 0)
    def _():
        o_ref[...] = jnp.zeros_like(o_ref)

    acc = jnp.dot(p_ref[0], w_ref[...], preferred_element_type=jnp.float32)
    acc = jnp.maximum(acc + b_ref[...], 0.0)          # (TS, OCP) f32
    # Mask rows that are spatial padding (S was rounded up to a multiple of TS).
    row = s_blk * ts + lax.broadcasted_iota(jnp.int32, (ts, 1), 0)
    acc = jnp.where(row < s_valid, acc, 0.0)
    o_ref[...] += jnp.sum(acc, axis=0).reshape(1, 1, -1)

    @pl.when(s_blk == pl.num_programs(1) - 1)
    def _():
        o_ref[...] = o_ref[...] * (1.0 / s_valid)     # finalize mean


# ---------------- pallas_call wrappers ----------------

_VMEM_LIMIT = 32 * 1024 * 1024  # safe on v5e/v6e (128 MiB phys) and v7x (64 MiB phys)


def conv_relu_pallas(x_nhwc, w_oihw, b, stride, pad, *, mxu_dtype=jnp.bfloat16,
                     tm_target=512):
    """Conv2d(stride, zero-pad `pad`) + bias + ReLU, tiled over M with pipelining."""
    N, H, W, C = x_nhwc.shape
    OC, IC, KH, KW = w_oihw.shape
    assert IC == C
    xp = jnp.pad(x_nhwc, ((0, 0), (pad, pad), (pad, pad), (0, 0)))
    patches, oh, ow = _im2col(xp, KH, KW, stride)
    M, K = patches.shape

    OCP = _round_up(OC, 128)                          # lane-dense output channels
    TM = min(tm_target, _round_up(M, 8))              # M tile (multiple of 8)
    M_pad = _round_up(M, TM)
    patches = jnp.pad(patches, ((0, M_pad - M), (0, 0))).astype(mxu_dtype)
    w_mat, b2 = _prep_weights(w_oihw, b, OCP, mxu_dtype)

    itemsize = jnp.dtype(mxu_dtype).itemsize
    cost = pl.CostEstimate(
        flops=2 * M_pad * K * OCP,
        transcendentals=0,
        bytes_accessed=M_pad * K * itemsize + K * OCP * itemsize + M_pad * OCP * 4,
    )

    out = pl.pallas_call(
        _conv_relu_kernel,
        out_shape=jax.ShapeDtypeStruct((M_pad, OCP), jnp.float32),
        grid=(M_pad // TM,),
        in_specs=[
            pl.BlockSpec((TM, K), lambda i: (i, 0)),      # patch tile, pipelined
            pl.BlockSpec((K, OCP), lambda i: (0, 0)),     # weights resident
            pl.BlockSpec((1, OCP), lambda i: (0, 0)),     # bias resident
        ],
        out_specs=pl.BlockSpec((TM, OCP), lambda i: (i, 0)),
        compiler_params=pltpu.CompilerParams(
            dimension_semantics=("parallel",),
            vmem_limit_bytes=_VMEM_LIMIT,
        ),
        cost_estimate=cost,
    )(patches, w_mat, b2)

    return out[:M, :OC].reshape(N, oh, ow, OC)


def conv_relu_mean_pallas(x_nhwc, w_oihw, b, stride, pad, *, mxu_dtype=jnp.bfloat16,
                          ts_target=512):
    """Conv2d + bias + ReLU fused with the global spatial mean -> (N, OC)."""
    N, H, W, C = x_nhwc.shape
    OC, IC, KH, KW = w_oihw.shape
    assert IC == C
    xp = jnp.pad(x_nhwc, ((0, 0), (pad, pad), (pad, pad), (0, 0)))
    patches, oh, ow = _im2col(xp, KH, KW, stride)
    K = patches.shape[1]
    S = oh * ow                                       # spatial positions per batch elem

    OCP = _round_up(OC, 128)
    TS = min(ts_target, _round_up(S, 8))
    S_pad = _round_up(S, TS)
    patches = patches.reshape(N, S, K)
    patches = jnp.pad(patches, ((0, 0), (0, S_pad - S), (0, 0))).astype(mxu_dtype)
    w_mat, b2 = _prep_weights(w_oihw, b, OCP, mxu_dtype)

    itemsize = jnp.dtype(mxu_dtype).itemsize
    cost = pl.CostEstimate(
        flops=2 * N * S_pad * K * OCP,
        transcendentals=0,
        bytes_accessed=N * S_pad * K * itemsize + K * OCP * itemsize + N * OCP * 4,
    )

    kernel = functools.partial(_conv_relu_mean_kernel, ts=TS, s_valid=S)
    out = pl.pallas_call(
        kernel,
        out_shape=jax.ShapeDtypeStruct((N, 1, OCP), jnp.float32),
        grid=(N, S_pad // TS),
        in_specs=[
            pl.BlockSpec((1, TS, K), lambda n, s: (n, s, 0)),
            pl.BlockSpec((K, OCP), lambda n, s: (0, 0)),
            pl.BlockSpec((1, OCP), lambda n, s: (0, 0)),
        ],
        out_specs=pl.BlockSpec((1, 1, OCP), lambda n, s: (n, 0, 0)),
        compiler_params=pltpu.CompilerParams(
            dimension_semantics=("parallel", "arbitrary"),
            vmem_limit_bytes=_VMEM_LIMIT,
        ),
        cost_estimate=cost,
    )(patches, w_mat, b2)

    return out[:, 0, :OC]


# ---------------- full forward ----------------

@functools.partial(jax.jit, static_argnames=("mxu_dtype",))
def style_encoder_nocond(x_nchw, params, mxu_dtype=jnp.bfloat16):
    """Forward pass equivalent to StyleEncodernocond.forward (returns (N, nf))."""
    w1, b1, w2, b2, w3, b3 = params
    x = jnp.transpose(x_nchw, (0, 2, 3, 1))                                # NCHW -> NHWC
    x = conv_relu_pallas(x, w1, b1, stride=2, pad=1, mxu_dtype=mxu_dtype)  # 7x7/2 + ReLU
    x = conv_relu_pallas(x, w2, b2, stride=2, pad=1, mxu_dtype=mxu_dtype)  # 3x3/2 + ReLU
    # conv3 + ReLU + global spatial mean, fused in one kernel.
    return conv_relu_mean_pallas(x, w3, b3, stride=2, pad=1, mxu_dtype=mxu_dtype)


# ---------------- pure-JAX reference (for correctness check) ----------------

def _ref_forward(x_nchw, params):
    w1, b1, w2, b2, w3, b3 = params

    def conv(x, w, b):
        y = lax.conv_general_dilated(
            x, w, window_strides=(2, 2), padding=((1, 1), (1, 1)),
            dimension_numbers=("NCHW", "OIHW", "NCHW"))
        return jax.nn.relu(y + b[None, :, None, None])

    y = conv(x_nchw, w1, b1)
    y = conv(y, w2, b2)
    y = conv(y, w3, b3)
    return jnp.mean(y, axis=(2, 3))


if __name__ == "__main__":
    in_nc, nf = 3, 32
    key = jax.random.PRNGKey(0)
    kx, kw1, kb1, kw2, kb2, kw3, kb3 = jax.random.split(key, 7)

    # Small deterministic input / parameters (PyTorch OIHW weight layout).
    x = jax.random.normal(kx, (2, in_nc, 16, 16), jnp.float32)
    w1 = jax.random.normal(kw1, (nf, in_nc, 7, 7), jnp.float32) * 0.1
    b1 = jax.random.normal(kb1, (nf,), jnp.float32) * 0.1
    w2 = jax.random.normal(kw2, (nf, nf, 3, 3), jnp.float32) * 0.1
    b2 = jax.random.normal(kb2, (nf,), jnp.float32) * 0.1
    w3 = jax.random.normal(kw3, (nf, nf, 3, 3), jnp.float32) * 0.1
    b3 = jax.random.normal(kb3, (nf,), jnp.float32) * 0.1
    params = (w1, b1, w2, b2, w3, b3)

    # bf16-MXU path (recommended on v6e/v7x) and an f32 path for a tight check.
    out_bf16 = style_encoder_nocond(x, params)                         # default: bf16 MXU
    out_f32 = style_encoder_nocond(x, params, mxu_dtype=jnp.float32)
    out_bf16, out_f32 = jax.block_until_ready((out_bf16, out_f32))

    ref = _ref_forward(x, params)
    assert out_f32.shape == (2, nf), out_f32.shape
    assert out_bf16.shape == (2, nf), out_bf16.shape
    assert jnp.allclose(out_f32, ref, atol=2e-4, rtol=2e-4), "f32 path mismatch vs reference conv"
    assert float(jnp.max(jnp.abs(out_bf16 - ref))) < 1e-1, "bf16 MXU path too far from reference"

    print("KERNEL_OK")
</pallas_src>

<mosaic_0001>
module attributes {stable_mosaic.version = 11 : i64} {
  func.func @_conv_relu_kernel(%arg0: i32, %arg1: memref<72x147xbf16, #tpu.memory_space<vmem>>, %arg2: memref<147x128xbf16, #tpu.memory_space<vmem>>, %arg3: memref<1x128xf32, #tpu.memory_space<vmem>>, %arg4: memref<72x128xf32, #tpu.memory_space<vmem>>) attributes {dimension_semantics = [#tpu.dimension_semantics<parallel>], iteration_bounds = array<i64: 1>, scalar_prefetch = 0 : i64, scratch_operands = 0 : i64, tpu.core_type = #tpu.core_type<tc>, window_params = [{transform_indices = @transform_0, window_bounds = array<i64: 72, 147>}, {pipeline_mode = #tpu.pipeline_mode<synchronous>, transform_indices = @transform_1, window_bounds = array<i64: 147, 128>}, {pipeline_mode = #tpu.pipeline_mode<synchronous>, transform_indices = @transform_2, window_bounds = array<i64: 1, 128>}, {transform_indices = @transform_3, window_bounds = array<i64: 72, 128>}]} {
    %c0 = arith.constant 0 : index
    %c0_0 = arith.constant 0 : index
    %0 = vector.load %arg1[%c0, %c0_0] : memref<72x147xbf16, #tpu.memory_space<vmem>>, vector<72x147xbf16>
    %c0_1 = arith.constant 0 : index
    %c0_2 = arith.constant 0 : index
    %1 = vector.load %arg2[%c0_1, %c0_2] : memref<147x128xbf16, #tpu.memory_space<vmem>>, vector<147x128xbf16>
    %cst = arith.constant dense<0.000000e+00> : vector<72x128xf32>
    %2 = tpu.matmul %0, %1, %cst {dimension_numbers = #tpu.dot_dimension_numbers<[1], [0], [0], [1], [0, 0, 1, 1], [], []>} : vector<72x147xbf16>, vector<147x128xbf16>, vector<72x128xf32> -> vector<72x128xf32>
    %c0_3 = arith.constant 0 : index
    %c0_4 = arith.constant 0 : index
    %3 = vector.load %arg3[%c0_3, %c0_4] : memref<1x128xf32, #tpu.memory_space<vmem>>, vector<1x128xf32>
    %4 = vector.broadcast %3 : vector<1x128xf32> to vector<72x128xf32>
    %5 = arith.addf %2, %4 : vector<72x128xf32>
    %cst_5 = arith.constant 0.000000e+00 : f32
    %6 = vector.broadcast %cst_5 : f32 to vector<72x128xf32>
    %7 = arith.maximumf %5, %6 : vector<72x128xf32>
    %c0_6 = arith.constant 0 : index
    %c0_7 = arith.constant 0 : index
    %8 = vector.load %arg4[%c0_6, %c0_7] : memref<72x128xf32, #tpu.memory_space<vmem>>, vector<72x128xf32>
    tpu.vector_store %arg4[%c0_6, %c0_7], %7 {strides = array<i32>} : memref<72x128xf32, #tpu.memory_space<vmem>>, vector<72x128xf32>,
    return
  }
  func.func @transform_0(%arg0: i32) -> (i32, i32) {
    %c0_i32 = arith.constant 0 : i32
    %c0_i32_0 = arith.constant 0 : i32
    return %arg0, %c0_i32 : i32, i32
  }
  func.func @transform_1(%arg0: i32) -> (i32, i32) {
    %c0_i32 = arith.constant 0 : i32
    %c0_i32_0 = arith.constant 0 : i32
    %c0_i32_1 = arith.constant 0 : i32
    return %c0_i32, %c0_i32_0 : i32, i32
  }
  func.func @transform_2(%arg0: i32) -> (i32, i32) {
    %c0_i32 = arith.constant 0 : i32
    %c0_i32_0 = arith.constant 0 : i32
    %c0_i32_1 = arith.constant 0 : i32
    return %c0_i32, %c0_i32_0 : i32, i32
  }
  func.func @transform_3(%arg0: i32) -> (i32, i32) {
    %c0_i32 = arith.constant 0 : i32
    %c0_i32_0 = arith.constant 0 : i32
    return %arg0, %c0_i32 : i32, i32
  }
}

module attributes {stable_mosaic.version = 11 : i64} {
  func.func @_conv_relu_kernel(%arg0: i32, %arg1: memref<24x288xbf16, #tpu.memory_space<vmem>>, %arg2: memref<288x128xbf16, #tpu.memory_space<vmem>>, %arg3: memref<1x128xf32, #tpu.memory_space<vmem>>, %arg4: memref<24x128xf32, #tpu.memory_space<vmem>>) attributes {dimension_semantics = [#tpu.dimension_semantics<parallel>], iteration_bounds = array<i64: 1>, scalar_prefetch = 0 : i64, scratch_operands = 0 : i64, tpu.core_type = #tpu.core_type<tc>, window_params = [{transform_indices = @transform_0, window_bounds = array<i64: 24, 288>}, {pipeline_mode = #tpu.pipeline_mode<synchronous>, transform_indices = @transform_1, window_bounds = array<i64: 288, 128>}, {pipeline_mode = #tpu.pipeline_mode<synchronous>, transform_indices = @transform_2, window_bounds = array<i64: 1, 128>}, {transform_indices = @transform_3, window_bounds = array<i64: 24, 128>}]} {
    %c0 = arith.constant 0 : index
    %c0_0 = arith.constant 0 : index
    %0 = vector.load %arg1[%c0, %c0_0] : memref<24x288xbf16, #tpu.memory_space<vmem>>, vector<24x288xbf16>
    %c0_1 = arith.constant 0 : index
    %c0_2 = arith.constant 0 : index
    %1 = vector.load %arg2[%c0_1, %c0_2] : memref<288x128xbf16, #tpu.memory_space<vmem>>, vector<288x128xbf16>
    %cst = arith.constant dense<0.000000e+00> : vector<24x128xf32>
    %2 = tpu.matmul %0, %1, %cst {dimension_numbers = #tpu.dot_dimension_numbers<[1], [0], [0], [1], [0, 0, 1, 1], [], []>} : vector<24x288xbf16>, vector<288x128xbf16>, vector<24x128xf32> -> vector<24x128xf32>
    %c0_3 = arith.constant 0 : index
    %c0_4 = arith.constant 0 : index
    %3 = vector.load %arg3[%c0_3, %c0_4] : memref<1x128xf32, #tpu.memory_space<vmem>>, vector<1x128xf32>
    %4 = vector.broadcast %3 : vector<1x128xf32> to vector<24x128xf32>
    %5 = arith.addf %2, %4 : vector<24x128xf32>
    %cst_5 = arith.constant 0.000000e+00 : f32
    %6 = vector.broadcast %cst_5 : f32 to vector<24x128xf32>
    %7 = arith.maximumf %5, %6 : vector<24x128xf32>
    %c0_6 = arith.constant 0 : index
    %c0_7 = arith.constant 0 : index
    %8 = vector.load %arg4[%c0_6, %c0_7] : memref<24x128xf32, #tpu.memory_space<vmem>>, vector<24x128xf32>
    tpu.vector_store %arg4[%c0_6, %c0_7], %7 {strides = array<i32>} : memref<24x128xf32, #tpu.memory_space<vmem>>, vector<24x128xf32>,
    return
  }
  func.func @transform_0(%arg0: i32) -> (i32, i32) {
    %c0_i32 = arith.constant 0 : i32
    %c0_i32_0 = arith.constant 0 : i32
    return %arg0, %c0_i32 : i32, i32
  }
  func.func @transform_1(%arg0: i32) -> (i32, i32) {
    %c0_i32 = arith.constant 0 : i32
    %c0_i32_0 = arith.constant 0 : i32
    %c0_i32_1 = arith.constant 0 : i32
    return %c0_i32, %c0_i32_0 : i32, i32
  }
  func.func @transform_2(%arg0: i32) -> (i32, i32) {
    %c0_i32 = arith.constant 0 : i32
    %c0_i32_0 = arith.constant 0 : i32
    %c0_i32_1 = arith.constant 0 : i32
    return %c0_i32, %c0_i32_0 : i32, i32
  }
  func.func @transform_3(%arg0: i32) -> (i32, i32) {
    %c0_i32 = arith.constant 0 : i32
    %c0_i32_0 = arith.constant 0 : i32
    return %arg0, %c0_i32 : i32, i32
  }
}

module attributes {stable_mosaic.version = 11 : i64} {
  func.func @_conv_relu_mean_kernel(%arg0: i32, %arg1: i32, %arg2: memref<1x8x288xbf16, #tpu.memory_space<vmem>>, %arg3: memref<288x128xbf16, #tpu.memory_space<vmem>>, %arg4: memref<1x128xf32, #tpu.memory_space<vmem>>, %arg5: memref<1x1x128xf32, #tpu.memory_space<vmem>>) attributes {dimension_semantics = [#tpu.dimension_semantics<parallel>, #tpu.dimension_semantics<arbitrary>], iteration_bounds = array<i64: 2, 1>, scalar_prefetch = 0 : i64, scratch_operands = 0 : i64, tpu.core_type = #tpu.core_type<tc>, window_params = [{transform_indices = @transform_0, window_bounds = array<i64: 1, 8, 288>}, {pipeline_mode = #tpu.pipeline_mode<synchronous>, transform_indices = @transform_1, window_bounds = array<i64: 288, 128>}, {pipeline_mode = #tpu.pipeline_mode<synchronous>, transform_indices = @transform_2, window_bounds = array<i64: 1, 128>}, {transform_indices = @transform_3, window_bounds = array<i64: 1, 1, 128>}]} {
    %c0_i32 = arith.constant 0 : i32
    %0 = arith.cmpi eq, %arg1, %c0_i32 : i32
    %1 = arith.extui %0 : i1 to i32
    %c0_i32_0 = arith.constant 0 : i32
    %2 = arith.cmpi ne, %1, %c0_i32_0 : i32
    scf.if %2 {
      %cst_18 = arith.constant 0.000000e+00 : f32
      %30 = vector.broadcast %cst_18 : f32 to vector<1x1x128xf32>
      %c0_19 = arith.constant 0 : index
      %c0_20 = arith.constant 0 : index
      %c0_21 = arith.constant 0 : index
      %31 = vector.load %arg5[%c0_19, %c0_20, %c0_21] : memref<1x1x128xf32, #tpu.memory_space<vmem>>, vector<1x1x128xf32>
      tpu.vector_store %arg5[%c0_19, %c0_20, %c0_21], %30 {strides = array<i32>} : memref<1x1x128xf32, #tpu.memory_space<vmem>>, vector<1x1x128xf32>,
    } else {
    }
    %c0 = arith.constant 0 : index
    %c0_1 = arith.constant 0 : index
    %c0_2 = arith.constant 0 : index
    %3 = vector.load %arg2[%c0, %c0_1, %c0_2] : memref<1x8x288xbf16, #tpu.memory_space<vmem>>, vector<1x8x288xbf16>
    %4 = vector.shape_cast %3 : vector<1x8x288xbf16> to vector<8x288xbf16>
    %c0_3 = arith.constant 0 : index
    %c0_4 = arith.constant 0 : index
    %5 = vector.load %arg3[%c0_3, %c0_4] : memref<288x128xbf16, #tpu.memory_space<vmem>>, vector<288x128xbf16>
    %cst = arith.constant dense<0.000000e+00> : vector<8x128xf32>
    %6 = tpu.matmul %4, %5, %cst {dimension_numbers = #tpu.dot_dimension_numbers<[1], [0], [0], [1], [0, 0, 1, 1], [], []>} : vector<8x288xbf16>, vector<288x128xbf16>, vector<8x128xf32> -> vector<8x128xf32>
    %c0_5 = arith.constant 0 : index
    %c0_6 = arith.constant 0 : index
    %7 = vector.load %arg4[%c0_5, %c0_6] : memref<1x128xf32, #tpu.memory_space<vmem>>, vector<1x128xf32>
    %8 = vector.broadcast %7 : vector<1x128xf32> to vector<8x128xf32>
    %9 = arith.addf %6, %8 : vector<8x128xf32>
    %cst_7 = arith.constant 0.000000e+00 : f32
    %10 = vector.broadcast %cst_7 : f32 to vector<8x128xf32>
    %11 = arith.maximumf %9, %10 : vector<8x128xf32>
    %c8_i32 = arith.constant 8 : i32
    %12 = arith.muli %arg1, %c8_i32 : i32
    %13 = tpu.iota {dimensions = array<i32: 0>} : vector<8x1xi32>
    %14 = vector.broadcast %12 : i32 to vector<8x1xi32>
    %15 = arith.addi %14, %13 : vector<8x1xi32>
    %c4_i32 = arith.constant 4 : i32
    %16 = vector.broadcast %c4_i32 : i32 to vector<8x1xi32>
    %17 = arith.cmpi slt, %15, %16 : vector<8x1xi32>
    %cst_8 = arith.constant 0.000000e+00 : f32
    %18 = vector.shape_cast %17 : vector<8x1xi1> to vector<8x1xi1>
    %19 = vector.broadcast %18 : vector<8x1xi1> to vector<8x128xi1>
    %20 = vector.broadcast %cst_8 : f32 to vector<8x128xf32>
    %21 = arith.select %19, %11, %20 : vector<8x128xi1>, vector<8x128xf32>
    %c0_9 = arith.constant 0 : index
    %c0_10 = arith.constant 0 : index
    %c0_11 = arith.constant 0 : index
    %22 = vector.load %arg5[%c0_9, %c0_10, %c0_11] : memref<1x1x128xf32, #tpu.memory_space<vmem>>, vector<1x1x128xf32>
    %cst_12 = arith.constant dense<0.000000e+00> : vector<128xf32>
    %23 = vector.multi_reduction <add>, %21, %cst_12 [0] : vector<8x128xf32> to vector<128xf32>
    %24 = vector.shape_cast %23 : vector<128xf32> to vector<1x1x128xf32>
    %25 = arith.addf %22, %24 : vector<1x1x128xf32>
    %c0_13 = arith.constant 0 : index
    %c0_14 = arith.constant 0 : index
    %c0_15 = arith.constant 0 : index
    %26 = vector.load %arg5[%c0_13, %c0_14, %c0_15] : memref<1x1x128xf32, #tpu.memory_space<vmem>>, vector<1x1x128xf32>
    tpu.vector_store %arg5[%c0_13, %c0_14, %c0_15], %25 {strides = array<i32>} : memref<1x1x128xf32, #tpu.memory_space<vmem>>, vector<1x1x128xf32>,
    %c0_i32_16 = arith.constant 0 : i32
    %27 = arith.cmpi eq, %arg1, %c0_i32_16 : i32
    %28 = arith.extui %27 : i1 to i32
    %c0_i32_17 = arith.constant 0 : i32
    %29 = arith.cmpi ne, %28, %c0_i32_17 : i32
    scf.if %29 {
      %c0_18 = arith.constant 0 : index
      %c0_19 = arith.constant 0 : index
      %c0_20 = arith.constant 0 : index
      %30 = vector.load %arg5[%c0_18, %c0_19, %c0_20] : memref<1x1x128xf32, #tpu.memory_space<vmem>>, vector<1x1x128xf32>
      %cst_21 = arith.constant 2.500000e-01 : f32
      %31 = vector.broadcast %cst_21 : f32 to vector<1x1x128xf32>
      %32 = arith.mulf %30, %31 : vector<1x1x128xf32>
      %c0_22 = arith.constant 0 : index
      %c0_23 = arith.constant 0 : index
      %c0_24 = arith.constant 0 : index
      %33 = vector.load %arg5[%c0_22, %c0_23, %c0_24] : memref<1x1x128xf32, #tpu.memory_space<vmem>>, vector<1x1x128xf32>
      tpu.vector_store %arg5[%c0_22, %c0_23, %c0_24], %32 {strides = array<i32>} : memref<1x1x128xf32, #tpu.memory_space<vmem>>, vector<1x1x128xf32>,
    } else {
    }
    return
  }
  func.func @transform_0(%arg0: i32, %arg1: i32) -> (i32, i32, i32) {
    %c0_i32 = arith.constant 0 : i32
    %c0_i32_0 = arith.constant 0 : i32
    return %arg0, %arg1, %c0_i32 : i32, i32, i32
  }
  func.func @transform_1(%arg0: i32, %arg1: i32) -> (i32, i32) {
    %c0_i32 = arith.constant 0 : i32
    %c0_i32_0 = arith.constant 0 : i32
    %c0_i32_1 = arith.constant 0 : i32
    return %c0_i32, %c0_i32_0 : i32, i32
  }
  func.func @transform_2(%arg0: i32, %arg1: i32) -> (i32, i32) {
    %c0_i32 = arith.constant 0 : i32
    %c0_i32_0 = arith.constant 0 : i32
    %c0_i32_1 = arith.constant 0 : i32
    return %c0_i32, %c0_i32_0 : i32, i32
  }
  func.func @transform_3(%arg0: i32, %arg1: i32) -> (i32, i32, i32) {
    %c0_i32 = arith.constant 0 : i32
    %c0_i32_0 = arith.constant 0 : i32
    %c0_i32_1 = arith.constant 0 : i32
    return %arg0, %c0_i32, %c0_i32_0 : i32, i32, i32
  }
}

</mosaic_0001>

<llo_original>
// kernel: style_encoder_nocond.3
$region0: #{style_encoder_nocond.3}
  #allocation0 [shape = 'u32[]', space=smem, size = 0x4, offset = 0x4, fixed_abs, tag = 'smem constant byte address 0x4 - core index']
  #allocation1 [shape = 'u32[72,128]{1,0:T(1,128)}', space=vmem, size = 0x9000, scoped, tag = 'internal scratch']
  %s0 = inlined_call_operand.vmem [shape: bf16[72,147], index: 0, kind: input, shape index: {}]
  %s1 = inlined_call_operand.vmem [shape: bf16[147,128], index: 1, kind: input, shape index: {}]
  %s2 = inlined_call_operand.vmem [shape: f32[1,128], index: 2, kind: input, shape index: {}]
  %s3 = inlined_call_operand.vmem [shape: f32[72,128], index: 3, kind: output, shape index: {}]
  %s4 = sld [smem:[#allocation0]]
  $region22: #{style_encoder_nocond.3} parent=0
    _
  %s6 = ssub.s32 1, %s4
  %s7 = scalar_select 0, %s6, %s4
  // Predicated region
  $region2: #{style_encoder_nocond.3} parent=0 // pred_check
    _
  $region3: #{style_encoder_nocond.3} parent=0 // pred_check_branch
    %9 = sbr.rel (0) target = $region5
  $region4: #{style_encoder_nocond.3} parent=0 // pred_region
    _
  $region5: #{style_encoder_nocond.3} parent=0 // pred_fallthru
    _
  // Predicated region
  $region6: #{style_encoder_nocond.3} parent=0 // pred_check
    _
  $region7: #{style_encoder_nocond.3} parent=0 // pred_check_branch
    %11 = sbr.rel (0) target = $region9
  $region8: #{style_encoder_nocond.3} parent=0 // pred_region
    _
  $region9: #{style_encoder_nocond.3} parent=0 // pred_fallthru
    _
  // Predicated region
  $region10: #{style_encoder_nocond.3} parent=0 // pred_check
    _
  $region11: #{style_encoder_nocond.3} parent=0 // pred_check_branch
    %13 = sbr.rel (0) target = $region13
  $region12: #{style_encoder_nocond.3} parent=0 // pred_region
    _
  $region13: #{style_encoder_nocond.3} parent=0 // pred_fallthru
    _
  %v15 = vld [vmem:[%s0] sm:$0xff]
  %v16 = vld [vmem:[%s0 + $0x8] sm:$0xff]
  %v17 = vld [vmem:[%s0 + $0x10] sm:$0xff]
  %v18 = vld [vmem:[%s0 + $0x18] sm:$0xff]
  %v19 = vld [vmem:[%s0 + $0x20] sm:$0xff]
  %v20 = vld [vmem:[%s0 + $0x28] sm:$0xff]
  %v21 = vld [vmem:[%s0 + $0x30] sm:$0xff]
  %v22 = vld [vmem:[%s0 + $0x38] sm:$0xff]
  %v23 = vld [vmem:[%s0 + $0x40] sm:$0xff]
  %v24 = vld [vmem:[%s1] sm:$0xf]
  %v25 = vld [vmem:[%s1 + $0x4] sm:$0xf]
  %v26 = vld [vmem:[%s1 + $0x8] sm:$0xf]
  %v27 = vld [vmem:[%s1 + $0xc] sm:$0xf]
  %v28 = vld [vmem:[%s1 + $0x10] sm:$0xf]
  %v29 = vld [vmem:[%s1 + $0x14] sm:$0xf]
  %v30 = vld [vmem:[%s1 + $0x18] sm:$0xf]
  %v31 = vld [vmem:[%s1 + $0x1c] sm:$0xf]
  %v32 = vld [vmem:[%s1 + $0x20] sm:$0xf]
  %v33 = vld [vmem:[%s1 + $0x24] sm:$0xf]
  %v34 = vld [vmem:[%s1 + $0x28] sm:$0xf]
  %v35 = vld [vmem:[%s1 + $0x2c] sm:$0xf]
  %v36 = vld [vmem:[%s1 + $0x30] sm:$0xf]
  %v37 = vld [vmem:[%s1 + $0x34] sm:$0xf]
  %v38 = vld [vmem:[%s1 + $0x38] sm:$0xf]
  %v39 = vld [vmem:[%s1 + $0x3c] sm:$0xf]
  %v40 = vld [vmem:[%s1 + $0x40] sm:$0xf]
  %v41 = vld [vmem:[%s1 + $0x44] sm:$0xf]
  %v42 = vld [vmem:[%s1 + $0x48] sm:$0x3]
  %v43 = vld [vmem:[%s2] sm:$0x1]
  %v45 = vperm.slane %v43, 0
  %v56 = vunpack.c.l.b16 %v15
  %v57 = vunpack.c.h.b16 %v15
  %v58 = vunpack.c.l.b16 %v16
  %v59 = vunpack.c.h.b16 %v16
  %v60 = vunpack.c.l.b16 %v17
  %v61 = vunpack.c.h.b16 %v17
  %v62 = vunpack.c.l.b16 %v18
  %v63 = vunpack.c.h.b16 %v18
  %v64 = vunpack.c.l.b16 %v19
  %v65 = vunpack.c.h.b16 %v19
  %v66 = vunpack.c.l.b16 %v20
  %v67 = vunpack.c.h.b16 %v20
  %v68 = vunpack.c.l.b16 %v21
  %v69 = vunpack.c.h.b16 %v21
  %v70 = vunpack.c.l.b16 %v22
  %v71 = vunpack.c.h.b16 %v22
  %v72 = vunpack.c.l.b16 %v23
  %v73 = vunpack.c.h.b16 %v23
  %v74 = vpack.c.b16 %v58, %v56
  %v75 = vpack.c.b16 %v59, %v57
  %v76 = vpack.c.b16 %v62, %v60
  %v77 = vpack.c.b16 %v63, %v61
  %v78 = vpack.c.b16 %v66, %v64
  %v79 = vpack.c.b16 %v67, %v65
  %v80 = vpack.c.b16 %v70, %v68
  %v81 = vpack.c.b16 %v71, %v69
  %v82 = vpack.c.b16 %v72, %v72
  %v83 = vpack.c.b16 %v73, %v73
  %v108 = vunpack.c.l.b16 %v24
  %v109 = vunpack.c.l.b16 %v25
  %v110 = vunpack.c.l.b16 %v26
  %v111 = vunpack.c.l.b16 %v27
  %v112 = vunpack.c.l.b16 %v28
  %v113 = vunpack.c.l.b16 %v29
  %v114 = vunpack.c.l.b16 %v30
  %v115 = vunpack.c.l.b16 %v31
  %v116 = vunpack.c.l.b16 %v32
  %v117 = vunpack.c.l.b16 %v33
  %v118 = vunpack.c.l.b16 %v34
  %v119 = vunpack.c.l.b16 %v35
  %v120 = vunpack.c.l.b16 %v36
  %v121 = vunpack.c.l.b16 %v37
  %v122 = vunpack.c.l.b16 %v38
  %v123 = vunpack.c.l.b16 %v39
  %v124 = vunpack.c.l.b16 %v40
  %v125 = vunpack.c.l.b16 %v41
  %v126 = vunpack.c.l.b16 %v42
  %v127 = vpack.c.b16 %v109, %v108
  %v128 = vpack.c.b16 %v111, %v110
  %v129 = vpack.c.b16 %v113, %v112
  %v130 = vpack.c.b16 %v115, %v114
  %v131 = vpack.c.b16 %v117, %v116
  %v132 = vpack.c.b16 %v119, %v118
  %v133 = vpack.c.b16 %v121, %v120
  %v134 = vpack.c.b16 %v123, %v122
  %v135 = vpack.c.b16 %v125, %v124
  %v136 = vpack.c.b16 %v126, %v126
  %vm146 = vcmask 154624
  %v148 = vsel %vm146, %v75, 0
  %v151 = vsel %vm146, %v77, 0
  %v154 = vsel %vm146, %v79, 0
  %v157 = vsel %vm146, %v81, 0
  %v160 = vsel %vm146, %v83, 0
  %vm162 = vcmask 1040384
  %vm163 = vcmask 1041408
  %v164 = vsel %vm162, 4294967295, 65535
  %v165 = vsel %vm163, %v164, 0
  %v167 = vand.u32 %v136, %v165
  %169 = vmatpush.bf16.msra.mxu0 %v134
  %170 = vmatpush.bf16.msra.mxu0 %v133
  %171 = vmatpush.bf16.msra.mxu0 %v132
  %172 = vmatpush.bf16.msra.mxu0 %v131
  %173 = vmatpush.bf16.msra.mxu0 %v130
  %174 = vmatpush.bf16.msra.mxu0 %v129
  %175 = vmatpush.bf16.msra.mxu0 %v128
  %176 = vmatpush.bf16.msra.mxu0 %v127
  %177 = vmatmul.bf16.gmra.mxu0 %v74
  %v178 = vpop.f32.mrf.mxu0
  %v179 = vadd.f32 %v45, %v178
  %v180 = vpop.f32.mrf.mxu0
  %v181 = vadd.f32 %v45, %v180
  %182 = vmatmul.bf16.gmra.mxu0 %v76
  %v183 = vpop.f32.mrf.mxu0
  %v184 = vadd.f32 %v45, %v183
  %v185 = vpop.f32.mrf.mxu0
  %v186 = vadd.f32 %v45, %v185
  %187 = vmatmul.bf16.gmra.mxu0 %v78
  %v188 = vpop.f32.mrf.mxu0
  %v189 = vadd.f32 %v45, %v188
  %v190 = vpop.f32.mrf.mxu0
  %v191 = vadd.f32 %v45, %v190
  %192 = vmatmul.bf16.gmra.mxu0 %v80
  %v193 = vpop.f32.mrf.mxu0
  %v194 = vadd.f32 %v45, %v193
  %v195 = vpop.f32.mrf.mxu0
  %v196 = vadd.f32 %v45, %v195
  %197 = vmatmul.bf16.gmra.mxu0 %v82
  %v198 = vpop.f32.mrf.mxu0
  %v199 = vadd.f32 %v45, %v198
  %v200 = vpop.f32.mrf.mxu0
  %201 = vdwg.mxu0
  %202 = vmatpush.bf16.msra.mxu0 0
  %203 = vmatpush.bf16.msra.mxu0 0
  %204 = vmatpush.bf16.msra.mxu0 0
  %205 = vmatpush.bf16.msra.mxu0 0
  %206 = vmatpush.bf16.msra.mxu0 0
  %207 = vmatpush.bf16.msra.mxu0 0
  %208 = vmatpush.bf16.msra.mxu0 %v167
  %209 = vmatpush.bf16.msra.mxu0 %v135
  %210 = vmatmul.bf16.gmra.mxu0 %v148
  %v211 = vpop.f32.mrf.mxu0
  %v212 = vadd.f32 %v179, %v211
  %v213 = vpop.f32.mrf.mxu0
  %v214 = vadd.f32 %v181, %v213
  %215 = vmatmul.bf16.gmra.mxu0 %v151
  %v216 = vpop.f32.mrf.mxu0
  %v217 = vadd.f32 %v184, %v216
  %v218 = vpop.f32.mrf.mxu0
  %v219 = vadd.f32 %v186, %v218
  %220 = vmatmul.bf16.gmra.mxu0 %v154
  %v221 = vpop.f32.mrf.mxu0
  %v222 = vadd.f32 %v189, %v221
  %v223 = vpop.f32.mrf.mxu0
  %v224 = vadd.f32 %v191, %v223
  %225 = vmatmul.bf16.gmra.mxu0 %v157
  %v226 = vpop.f32.mrf.mxu0
  %v227 = vadd.f32 %v194, %v226
  %v228 = vpop.f32.mrf.mxu0
  %v229 = vadd.f32 %v196, %v228
  %230 = vmatmul.bf16.gmra.mxu0 %v160
  %v231 = vpop.f32.mrf.mxu0
  %v232 = vadd.f32 %v199, %v231
  %v233 = vpop.f32.mrf.mxu0
  %234 = vdwg.mxu0
  %v235 = vmax.f32 %v212, 0.0
  %v236 = vmax.f32 %v214, 0.0
  %v237 = vmax.f32 %v217, 0.0
  %v238 = vmax.f32 %v219, 0.0
  %v239 = vmax.f32 %v222, 0.0
  %v240 = vmax.f32 %v224, 0.0
  %v241 = vmax.f32 %v227, 0.0
  %v242 = vmax.f32 %v229, 0.0
  %v243 = vmax.f32 %v232, 0.0
  %244 = vst [vmem:[%s3] sm:$0xff] %v235
  %245 = vst [vmem:[%s3 + $0x8] sm:$0xff] %v236
  %246 = vst [vmem:[%s3 + $0x10] sm:$0xff] %v237
  %247 = vst [vmem:[%s3 + $0x18] sm:$0xff] %v238
  %248 = vst [vmem:[%s3 + $0x20] sm:$0xff] %v239
  %249 = vst [vmem:[%s3 + $0x28] sm:$0xff] %v240
  %250 = vst [vmem:[%s3 + $0x30] sm:$0xff] %v241
  %251 = vst [vmem:[%s3 + $0x38] sm:$0xff] %v242
  %252 = vst [vmem:[%s3 + $0x40] sm:$0xff] %v243
  // Predicated region
  $region14: #{style_encoder_nocond.3} parent=0 // pred_check
    _
  $region15: #{style_encoder_nocond.3} parent=0 // pred_check_branch
    %254 = sbr.rel (0) target = $region17
  $region16: #{style_encoder_nocond.3} parent=0 // pred_region
    _
  $region17: #{style_encoder_nocond.3} parent=0 // pred_fallthru
    _
  // Predicated region
  $region18: #{style_encoder_nocond.3} parent=0 // pred_check
    _
  $region19: #{style_encoder_nocond.3} parent=0 // pred_check_branch
    %256 = sbr.rel (0) target = $region21
  $region20: #{style_encoder_nocond.3} parent=0 // pred_region
    _
  $region21: #{style_encoder_nocond.3} parent=0 // pred_fallthru
    _

// kernel: style_encoder_nocond.4
$region0: #{style_encoder_nocond.4}
  #allocation0 [shape = 'u32[]', space=smem, size = 0x4, offset = 0x4, fixed_abs, tag = 'smem constant byte address 0x4 - core index']
  #allocation1 [shape = 'u32[72,128]{1,0:T(1,128)}', space=vmem, size = 0x9000, scoped, tag = 'internal scratch']
  %s0 = inlined_call_operand.vmem [shape: bf16[24,288], index: 0, kind: input, shape index: {}]
  %s1 = inlined_call_operand.vmem [shape: bf16[288,128], index: 1, kind: input, shape index: {}]
  %s2 = inlined_call_operand.vmem [shape: f32[1,128], index: 2, kind: input, shape index: {}]
  %s3 = inlined_call_operand.vmem [shape: f32[24,128], index: 3, kind: output, shape index: {}]
  %s4 = sld [smem:[#allocation0]]
  $region22: #{style_encoder_nocond.4} parent=0
    _
  %s6 = ssub.s32 1, %s4
  %s7 = scalar_select 0, %s6, %s4
  // Predicated region
  $region2: #{style_encoder_nocond.4} parent=0 // pred_check
    _
  $region3: #{style_encoder_nocond.4} parent=0 // pred_check_branch
    %9 = sbr.rel (0) target = $region5
  $region4: #{style_encoder_nocond.4} parent=0 // pred_region
    _
  $region5: #{style_encoder_nocond.4} parent=0 // pred_fallthru
    _
  // Predicated region
  $region6: #{style_encoder_nocond.4} parent=0 // pred_check
    _
  $region7: #{style_encoder_nocond.4} parent=0 // pred_check_branch
    %11 = sbr.rel (0) target = $region9
  $region8: #{style_encoder_nocond.4} parent=0 // pred_region
    _
  $region9: #{style_encoder_nocond.4} parent=0 // pred_fallthru
    _
  // Predicated region
  $region10: #{style_encoder_nocond.4} parent=0 // pred_check
    _
  $region11: #{style_encoder_nocond.4} parent=0 // pred_check_branch
    %13 = sbr.rel (0) target = $region13
  $region12: #{style_encoder_nocond.4} parent=0 // pred_region
    _
  $region13: #{style_encoder_nocond.4} parent=0 // pred_fallthru
    _
  %v15 = vld [vmem:[%s0] sm:$0xff]
  %v16 = vld [vmem:[%s0 + $0x8] sm:$0xf]
  %v17 = vld [vmem:[%s0 + $0xc] sm:$0xff]
  %v18 = vld [vmem:[%s0 + $0x14] sm:$0xf]
  %v19 = vld [vmem:[%s0 + $0x18] sm:$0xff]
  %v20 = vld [vmem:[%s0 + $0x20] sm:$0xf]
  %v21 = vld [vmem:[%s1] sm:$0xf]
  %v22 = vld [vmem:[%s1 + $0x4] sm:$0xf]
  %v23 = vld [vmem:[%s1 + $0x8] sm:$0xf]
  %v24 = vld [vmem:[%s1 + $0xc] sm:$0xf]
  %v25 = vld [vmem:[%s1 + $0x10] sm:$0xf]
  %v26 = vld [vmem:[%s1 + $0x14] sm:$0xf]
  %v27 = vld [vmem:[%s1 + $0x18] sm:$0xf]
  %v28 = vld [vmem:[%s1 + $0x1c] sm:$0xf]
  %v29 = vld [vmem:[%s1 + $0x20] sm:$0xf]
  %v30 = vld [vmem:[%s1 + $0x24] sm:$0xf]
  %v31 = vld [vmem:[%s1 + $0x28] sm:$0xf]
  %v32 = vld [vmem:[%s1 + $0x2c] sm:$0xf]
  %v33 = vld [vmem:[%s1 + $0x30] sm:$0xf]
  %v34 = vld [vmem:[%s1 + $0x34] sm:$0xf]
  %v35 = vld [vmem:[%s1 + $0x38] sm:$0xf]
  %v36 = vld [vmem:[%s1 + $0x3c] sm:$0xf]
  %v37 = vld [vmem:[%s1 + $0x40] sm:$0xf]
  %v38 = vld [vmem:[%s1 + $0x44] sm:$0xf]
  %v39 = vld [vmem:[%s1 + $0x48] sm:$0xf]
  %v40 = vld [vmem:[%s1 + $0x4c] sm:$0xf]
  %v41 = vld [vmem:[%s1 + $0x50] sm:$0xf]
  %v42 = vld [vmem:[%s1 + $0x54] sm:$0xf]
  %v43 = vld [vmem:[%s1 + $0x58] sm:$0xf]
  %v44 = vld [vmem:[%s1 + $0x5c] sm:$0xf]
  %v45 = vld [vmem:[%s1 + $0x60] sm:$0xf]
  %v46 = vld [vmem:[%s1 + $0x64] sm:$0xf]
  %v47 = vld [vmem:[%s1 + $0x68] sm:$0xf]
  %v48 = vld [vmem:[%s1 + $0x6c] sm:$0xf]
  %v49 = vld [vmem:[%s1 + $0x70] sm:$0xf]
  %v50 = vld [vmem:[%s1 + $0x74] sm:$0xf]
  %v51 = vld [vmem:[%s1 + $0x78] sm:$0xf]
  %v52 = vld [vmem:[%s1 + $0x7c] sm:$0xf]
  %v53 = vld [vmem:[%s1 + $0x80] sm:$0xf]
  %v54 = vld [vmem:[%s1 + $0x84] sm:$0xf]
  %v55 = vld [vmem:[%s1 + $0x88] sm:$0xf]
  %v56 = vld [vmem:[%s1 + $0x8c] sm:$0xf]
  %v57 = vld [vmem:[%s2] sm:$0x1]
  %v59 = vperm.slane %v57, 0
  %v67 = vunpack.c.l.b16 %v15
  %v68 = vunpack.c.h.b16 %v15
  %v69 = vunpack.c.l.b16 %v16
  %v70 = vunpack.c.l.b16 %v17
  %v71 = vunpack.c.h.b16 %v17
  %v72 = vunpack.c.l.b16 %v18
  %v73 = vunpack.c.l.b16 %v19
  %v74 = vunpack.c.h.b16 %v19
  %v75 = vunpack.c.l.b16 %v20
  %v76 = vpack.c.b16 %v70, %v67
  %v77 = vpack.c.b16 %v71, %v68
  %v78 = vpack.c.b16 %v72, %v69
  %v79 = vpack.c.b16 %v73, %v73
  %v80 = vpack.c.b16 %v74, %v74
  %v81 = vpack.c.b16 %v75, %v75
  %v122 = vunpack.c.l.b16 %v21
  %v123 = vunpack.c.l.b16 %v22
  %v124 = vunpack.c.l.b16 %v23
  %v125 = vunpack.c.l.b16 %v24
  %v126 = vunpack.c.l.b16 %v25
  %v127 = vunpack.c.l.b16 %v26
  %v128 = vunpack.c.l.b16 %v27
  %v129 = vunpack.c.l.b16 %v28
  %v130 = vunpack.c.l.b16 %v29
  %v131 = vunpack.c.l.b16 %v30
  %v132 = vunpack.c.l.b16 %v31
  %v133 = vunpack.c.l.b16 %v32
  %v134 = vunpack.c.l.b16 %v33
  %v135 = vunpack.c.l.b16 %v34
  %v136 = vunpack.c.l.b16 %v35
  %v137 = vunpack.c.l.b16 %v36
  %v138 = vunpack.c.l.b16 %v37
  %v139 = vunpack.c.l.b16 %v38
  %v140 = vunpack.c.l.b16 %v39
  %v141 = vunpack.c.l.b16 %v40
  %v142 = vunpack.c.l.b16 %v41
  %v143 = vunpack.c.l.b16 %v42
  %v144 = vunpack.c.l.b16 %v43
  %v145 = vunpack.c.l.b16 %v44
  %v146 = vunpack.c.l.b16 %v45
  %v147 = vunpack.c.l.b16 %v46
  %v148 = vunpack.c.l.b16 %v47
  %v149 = vunpack.c.l.b16 %v48
  %v150 = vunpack.c.l.b16 %v49
  %v151 = vunpack.c.l.b16 %v50
  %v152 = vunpack.c.l.b16 %v51
  %v153 = vunpack.c.l.b16 %v52
  %v154 = vunpack.c.l.b16 %v53
  %v155 = vunpack.c.l.b16 %v54
  %v156 = vunpack.c.l.b16 %v55
  %v157 = vunpack.c.l.b16 %v56
  %v158 = vpack.c.b16 %v123, %v122
  %v159 = vpack.c.b16 %v125, %v124
  %v160 = vpack.c.b16 %v127, %v126
  %v161 = vpack.c.b16 %v129, %v128
  %v162 = vpack.c.b16 %v131, %v130
  %v163 = vpack.c.b16 %v133, %v132
  %v164 = vpack.c.b16 %v135, %v134
  %v165 = vpack.c.b16 %v137, %v136
  %v166 = vpack.c.b16 %v139, %v138
  %v167 = vpack.c.b16 %v141, %v140
  %v168 = vpack.c.b16 %v143, %v142
  %v169 = vpack.c.b16 %v145, %v144
  %v170 = vpack.c.b16 %v147, %v146
  %v171 = vpack.c.b16 %v149, %v148
  %v172 = vpack.c.b16 %v151, %v150
  %v173 = vpack.c.b16 %v153, %v152
  %v174 = vpack.c.b16 %v155, %v154
  %v175 = vpack.c.b16 %v157, %v156
  %vm194 = vcmask 261120
  %v196 = vsel %vm194, %v78, 0
  %v199 = vsel %vm194, %v81, 0
  %201 = vmatpush.bf16.msra.mxu0 %v165
  %202 = vmatpush.bf16.msra.mxu0 %v164
  %203 = vmatpush.bf16.msra.mxu0 %v163
  %204 = vmatpush.bf16.msra.mxu0 %v162
  %205 = vmatpush.bf16.msra.mxu0 %v161
  %206 = vmatpush.bf16.msra.mxu0 %v160
  %207 = vmatpush.bf16.msra.mxu0 %v159
  %208 = vmatpush.bf16.msra.mxu0 %v158
  %209 = vmatmul.bf16.gmra.mxu0 %v76
  %v210 = vpop.f32.mrf.mxu0
  %v211 = vadd.f32 %v59, %v210
  %v212 = vpop.f32.mrf.mxu0
  %v213 = vadd.f32 %v59, %v212
  %214 = vmatmul.bf16.gmra.mxu0 %v79
  %v215 = vpop.f32.mrf.mxu0
  %v216 = vadd.f32 %v59, %v215
  %v217 = vpop.f32.mrf.mxu0
  %218 = vdwg.mxu0
  %219 = vmatpush.bf16.msra.mxu0 %v173
  %220 = vmatpush.bf16.msra.mxu0 %v172
  %221 = vmatpush.bf16.msra.mxu0 %v171
  %222 = vmatpush.bf16.msra.mxu0 %v170
  %223 = vmatpush.bf16.msra.mxu0 %v169
  %224 = vmatpush.bf16.msra.mxu0 %v168
  %225 = vmatpush.bf16.msra.mxu0 %v167
  %226 = vmatpush.bf16.msra.mxu0 %v166
  %227 = vmatmul.bf16.gmra.mxu0 %v77
  %v228 = vpop.f32.mrf.mxu0
  %v229 = vadd.f32 %v211, %v228
  %v230 = vpop.f32.mrf.mxu0
  %v231 = vadd.f32 %v213, %v230
  %232 = vmatmul.bf16.gmra.mxu0 %v80
  %v233 = vpop.f32.mrf.mxu0
  %v234 = vadd.f32 %v216, %v233
  %v235 = vpop.f32.mrf.mxu0
  %236 = vdwg.mxu0
  %237 = vmatpush.bf16.msra.mxu0 0
  %238 = vmatpush.bf16.msra.mxu0 0
  %239 = vmatpush.bf16.msra.mxu0 0
  %240 = vmatpush.bf16.msra.mxu0 0
  %241 = vmatpush.bf16.msra.mxu0 0
  %242 = vmatpush.bf16.msra.mxu0 0
  %243 = vmatpush.bf16.msra.mxu0 %v175
  %244 = vmatpush.bf16.msra.mxu0 %v174
  %245 = vmatmul.bf16.gmra.mxu0 %v196
  %v246 = vpop.f32.mrf.mxu0
  %v247 = vadd.f32 %v229, %v246
  %v248 = vpop.f32.mrf.mxu0
  %v249 = vadd.f32 %v231, %v248
  %250 = vmatmul.bf16.gmra.mxu0 %v199
  %v251 = vpop.f32.mrf.mxu0
  %v252 = vadd.f32 %v234, %v251
  %v253 = vpop.f32.mrf.mxu0
  %254 = vdwg.mxu0
  %v255 = vmax.f32 %v247, 0.0
  %v256 = vmax.f32 %v249, 0.0
  %v257 = vmax.f32 %v252, 0.0
  %258 = vst [vmem:[%s3] sm:$0xff] %v255
  %259 = vst [vmem:[%s3 + $0x8] sm:$0xff] %v256
  %260 = vst [vmem:[%s3 + $0x10] sm:$0xff] %v257
  // Predicated region
  $region14: #{style_encoder_nocond.4} parent=0 // pred_check
    _
  $region15: #{style_encoder_nocond.4} parent=0 // pred_check_branch
    %262 = sbr.rel (0) target = $region17
  $region16: #{style_encoder_nocond.4} parent=0 // pred_region
    _
  $region17: #{style_encoder_nocond.4} parent=0 // pred_fallthru
    _
  // Predicated region
  $region18: #{style_encoder_nocond.4} parent=0 // pred_check
    _
  $region19: #{style_encoder_nocond.4} parent=0 // pred_check_branch
    %264 = sbr.rel (0) target = $region21
  $region20: #{style_encoder_nocond.4} parent=0 // pred_region
    _
  $region21: #{style_encoder_nocond.4} parent=0 // pred_fallthru
    _

// kernel: style_encoder_nocond.5
$region0: #{style_encoder_nocond.5}
  #allocation0 [shape = 'u32[]', space=smem, size = 0x4, offset = 0x4, fixed_abs, tag = 'smem constant byte address 0x4 - core index']
  #allocation1 [shape = 'u32[72,128]{1,0:T(1,128)}', space=vmem, size = 0x9000, scoped, tag = 'internal scratch']
  %s0 = inlined_call_operand.vmem [shape: bf16[2,8,288], index: 0, kind: input, shape index: {}]
  %s1 = inlined_call_operand.vmem [shape: bf16[288,128], index: 1, kind: input, shape index: {}]
  %s2 = inlined_call_operand.vmem [shape: f32[1,128], index: 2, kind: input, shape index: {}]
  %s3 = inlined_call_operand.hbm [shape: f32[2,1,128], index: 3, kind: output, shape index: {}]
  %s4 = sld [smem:[#allocation0]]
  $region53: #{style_encoder_nocond.5} parent=0
    _
  %s6 = ssub.s32 1, %s4
  %s7 = scalar_select 0, %s6, %s4
  $region1: #{style_encoder_nocond.5} parent=0
    #allocation2 [shape = 'u8[1024]{0}', space=vmem, size = 0x400, scoped, tag = 'output window, operand 0']
    #allocation3 [shape = 's32[2]{0}', space=sflag, size = 0x8, scoped, tag = 'scoped memory for style_encoder_nocond.5']
    %8 = vsyncpa [#allocation3], 0
    %s9 = scalar_lea.sflag [#allocation3], 1
    %10 = vsyncpa %s9, 0
    loop: start=0, step=1, limit=4
    $region2: #{style_encoder_nocond.5} parent=1 // loop_pre_header
      _
    $region3: #{style_encoder_nocond.5} parent=1 // loop_header
      %s12 = sphi 0, %s16
      %p13 = scmp.ge.s32.totalorder %s12, 4
      %s19 = sphi 0, %s31
      %s20 = sphi 0, %s27
      %s21 = sphi 0, %s19
      %s22 = sphi 0, %s20
      %s23 = sphi 0, %s21
      %s24 = sphi 0, %s22
      %s36 = sphi 0, %s38
      %s39 = sphi 0, %s36
      %s40 = sphi 0, %s39
      %s56 = sphi 0, %s40
      %s60 = sphi 0, %s60
      %s62 = sphi 0, %s60
      %s63 = sphi 0, %s62
      %s77 = sphi 0, %s63
      %s81 = sphi 0, %s81
      %s83 = sphi 0, %s81
      %s84 = sphi 0, %s83
      %s98 = sphi 0, %s84
      %s104 = sphi 0, %s106
      %s107 = sphi 0, %s104
      %s108 = sphi 0, %s107
      %s124 = sphi 0, %s108
    $region4: #{style_encoder_nocond.5} parent=1 // loop_header_branch
      %15 = sbr.rel (%p13) target = $region8
    $region5: #{style_encoder_nocond.5} parent=1 // loop_body
      %s17 = ssub.s32 %s12, 1
      %s18 = ssub.s32 %s12, 2
      %s25 = sadd.s32 1, %s20
      %p26 = scmp.ge.s32.totalorder %s25, 1
      %s27 = scalar_select %p26, 0, %s25
      %s28 = sadd.s32 1, %s19
      %s29 = scalar_select %p26, %s28, %s19
      %p30 = scmp.ge.s32.totalorder %s29, 2
      %s31 = scalar_select %p30, 0, %s29
      %s32 = ssub.s32 %s19, %s31
      %s33 = ssub.s32 %s20, %s27
      %s34 = sor.u32 %s32, %s33
      %p35 = scmp.eq.s32.totalorder %s34, 0
      %s37 = sadd.s32 %s36, 1
      %s38 = scalar_select %p35, %s36, %s37
      %p41 = pneg %p35
      %p42 = scmp.eq.s32.totalorder %s12, 1
      %p43 = por %p41, %p42
      %p44 = scmp.ne.s32.totalorder %s36, %s39
      %p45 = scmp.eq.s32.totalorder %s12, 0
      %p46 = por %p44, %p45
      %p47 = scmp.ne.s32.totalorder %s36, %s39
      %p48 = scmp.eq.s32.totalorder %s17, 1
      %p49 = por %p47, %p48
      %p50 = scmp.ne.s32.totalorder %s39, %s40
      %p51 = scmp.eq.s32.totalorder %s17, 0
      %p52 = por %p50, %p51
      %p53 = scmp.ne.s32.totalorder %s39, %s40
      %p54 = scmp.eq.s32.totalorder %s18, 1
      %p55 = por %p53, %p54
      %p57 = scmp.ne.s32.totalorder %s40, %s56
      %p58 = scmp.eq.s32.totalorder %s18, 0
      %p59 = por %p57, %p58
      %s61 = sadd.s32 %s60, 1
      %p64 = scmp.eq.s32.totalorder %s12, 1
      %p65 = scmp.ne.s32.totalorder %s60, %s62
      %p66 = scmp.eq.s32.totalorder %s12, 0
      %p67 = por %p65, %p66
      %p68 = scmp.ne.s32.totalorder %s60, %s62
      %p69 = scmp.eq.s32.totalorder %s17, 1
      %p70 = por %p68, %p69
      %p71 = scmp.ne.s32.totalorder %s62, %s63
      %p72 = scmp.eq.s32.totalorder %s17, 0
      %p73 = por %p71, %p72
      %p74 = scmp.ne.s32.totalorder %s62, %s63
      %p75 = scmp.eq.s32.totalorder %s18, 1
      %p76 = por %p74, %p75
      %p78 = scmp.ne.s32.totalorder %s63, %s77
      %p79 = scmp.eq.s32.totalorder %s18, 0
      %p80 = por %p78, %p79
      %s82 = sadd.s32 %s81, 1
      %p85 = scmp.eq.s32.totalorder %s12, 1
      %p86 = scmp.ne.s32.totalorder %s81, %s83
      %p87 = scmp.eq.s32.totalorder %s12, 0
      %p88 = por %p86, %p87
      %p89 = scmp.ne.s32.totalorder %s81, %s83
      %p90 = scmp.eq.s32.totalorder %s17, 1
      %p91 = por %p89, %p90
      %p92 = scmp.ne.s32.totalorder %s83, %s84
      %p93 = scmp.eq.s32.totalorder %s17, 0
      %p94 = por %p92, %p93
      %p95 = scmp.ne.s32.totalorder %s83, %s84
      %p96 = scmp.eq.s32.totalorder %s18, 1
      %p97 = por %p95, %p96
      %p99 = scmp.ne.s32.totalorder %s84, %s98
      %p100 = scmp.eq.s32.totalorder %s18, 0
      %p101 = por %p99, %p100
      %s102 = ssub.s32 %s19, %s31
      %p103 = scmp.eq.s32.totalorder %s102, 0
      %s105 = sadd.s32 %s104, 1
      %s106 = scalar_select %p103, %s104, %s105
      %p109 = pneg %p103
      %p110 = scmp.eq.s32.totalorder %s12, 1
      %p111 = por %p109, %p110
      %p112 = scmp.ne.s32.totalorder %s104, %s107
      %p113 = scmp.eq.s32.totalorder %s12, 0
      %p114 = por %p112, %p113
      %p115 = scmp.ne.s32.totalorder %s104, %s107
      %p116 = scmp.eq.s32.totalorder %s17, 1
      %p117 = por %p115, %p116
      %p118 = scmp.ne.s32.totalorder %s107, %s108
      %p119 = scmp.eq.s32.totalorder %s17, 0
      %p120 = por %p118, %p119
      %p121 = scmp.ne.s32.totalorder %s107, %s108
      %p122 = scmp.eq.s32.totalorder %s18, 1
      %p123 = por %p121, %p122
      %p125 = scmp.ne.s32.totalorder %s108, %s124
      %p126 = scmp.eq.s32.totalorder %s18, 0
      %p127 = por %p125, %p126
      %p128 = scmp.le.s32.totalorder 1, %s12
      %p129 = scmp.lt.s32.totalorder %s12, 3
      %p130 = pnand %p128, %p129
      %p131 = pneg %p130
      // Predicated region
      $region9: #{style_encoder_nocond.5} parent=5 // pred_check
        _
      $region10: #{style_encoder_nocond.5} parent=5 // pred_check_branch
        %133 = sbr.rel (%p130) target = $region12
      $region11: #{style_encoder_nocond.5} parent=5 // pred_region
        %s134 = ssub.s32 %s12, 1
        // Predicated region
        $region13: #{style_encoder_nocond.5} parent=11 // pred_check
          %p135 = pneg %p73
        $region14: #{style_encoder_nocond.5} parent=11 // pred_check_branch
          %137 = sbr.rel (%p135) target = $region16
        $region15: #{style_encoder_nocond.5} parent=11 // pred_region
          _
        $region16: #{style_encoder_nocond.5} parent=11 // pred_fallthru
          _
        // Predicated region
        $region17: #{style_encoder_nocond.5} parent=11 // pred_check
          %p138 = pneg %p94
        $region18: #{style_encoder_nocond.5} parent=11 // pred_check_branch
          %140 = sbr.rel (%p138) target = $region20
        $region19: #{style_encoder_nocond.5} parent=11 // pred_region
          _
        $region20: #{style_encoder_nocond.5} parent=11 // pred_fallthru
          _
      $region12: #{style_encoder_nocond.5} parent=5 // pred_fallthru
        _
      %p141 = scmp.lt.s32.totalorder %s12, 2
      // Predicated region
      $region21: #{style_encoder_nocond.5} parent=5 // pred_check
        %p142 = pneg %p141
      $region22: #{style_encoder_nocond.5} parent=5 // pred_check_branch
        %144 = sbr.rel (%p142) target = $region24
      $region23: #{style_encoder_nocond.5} parent=5 // pred_region
        // Predicated region
        $region25: #{style_encoder_nocond.5} parent=23 // pred_check
          %p145 = pneg %p46
        $region26: #{style_encoder_nocond.5} parent=23 // pred_check_branch
          %147 = sbr.rel (%p145) target = $region28
        $region27: #{style_encoder_nocond.5} parent=23 // pred_region
          %p148 = scmp.lt.s32.totalorder %s19, 1
          %s149 = scalar_select %p148, %s19, 1
          %p150 = scmp.lt.s32.totalorder %s20, 0
          %s151 = scalar_select %p150, %s20, 0
          %s152 = smul.addr %s151, 3
          %s153 = smul.addr %s149, 3
          %s154 = sadd.s32 %s152, %s153
          %s155 = smul.addr %s154, 4
          %s156 = scalar_lea.vmem %s0, %s155
        $region28: #{style_encoder_nocond.5} parent=23 // pred_fallthru
          _
      $region24: #{style_encoder_nocond.5} parent=5 // pred_fallthru
        _
      %p157 = scmp.le.s32.totalorder 1, %s12
      %p158 = scmp.lt.s32.totalorder %s12, 3
      %p159 = pnand %p157, %p158
      %p160 = pneg %p159
      // Predicated region
      $region29: #{style_encoder_nocond.5} parent=5 // pred_check
        _
      $region30: #{style_encoder_nocond.5} parent=5 // pred_check_branch
        %162 = sbr.rel (%p159) target = $region32
      $region31: #{style_encoder_nocond.5} parent=5 // pred_region
        %s163 = ssub.s32 %s12, 1
        %p164 = scmp.lt.s32.totalorder %s21, 1
        %s165 = scalar_select %p164, %s21, 1
        %p166 = scmp.lt.s32.totalorder %s22, 0
        %s167 = scalar_select %p166, %s22, 0
        %s168 = smul.addr %s167, 3
        %s169 = smul.addr %s165, 3
        %s170 = sadd.s32 %s168, %s169
        %s171 = smul.addr %s170, 4
        %s172 = scalar_lea.vmem %s0, %s171
        %p173 = pneg %p52
        %p174 = pneg %p49
        %p175 = pneg %p73
        %p176 = pneg %p70
        %p177 = pneg %p94
        %p178 = pneg %p91
        %p179 = pneg %p120
        %p180 = pneg %p117
        %s181 = sand.u32 %s107, 1
        %s182 = scalar_lea.sflag [#allocation3], %s181
        %s183 = sand.u32 %s107, 1
        %s184 = scalar_lea.vmem [#allocation2], %s183
        %p185 = scmp.lt.s32.totalorder %s21, 1
        %s186 = scalar_select %p185, %s21, 1
        %p187 = scmp.lt.s32.totalorder %s22, 0
        %s188 = scalar_select %p187, %s22, 0
        %s189 = smul.addr %s188, 3
        %s190 = smul.addr %s186, 3
        %s191 = sadd.s32 %s189, %s190
        %s192 = smul.addr %s191, 4
        %s193 = scalar_lea.vmem %s0, %s192
        %p195 = scmp.eq.s32.totalorder %s22, 0
        // Predicated region
        $region33: #{style_encoder_nocond.5} parent=31 // pred_check
          %p196 = pneg %p195
        $region34: #{style_encoder_nocond.5} parent=31 // pred_check_branch
          %198 = sbr.rel (%p196) target = $region36
        $region35: #{style_encoder_nocond.5} parent=31 // pred_region
          %199 = vst [vmem:[%s184] sm:$0x1] 0.0
        $region36: #{style_encoder_nocond.5} parent=31 // pred_fallthru
          _
        %v200 = vld [vmem:[%s193] sm:$0xff]
        %v201 = vld [vmem:[%s193 + $0x8] sm:$0xf]
        %v202 = vld [vmem:[%s1] sm:$0xf]
        %v203 = vld [vmem:[%s1 + $0x4] sm:$0xf]
        %v204 = vld [vmem:[%s1 + $0x8] sm:$0xf]
        %v205 = vld [vmem:[%s1 + $0xc] sm:$0xf]
        %v206 = vld [vmem:[%s1 + $0x10] sm:$0xf]
        %v207 = vld [vmem:[%s1 + $0x14] sm:$0xf]
        %v208 = vld [vmem:[%s1 + $0x18] sm:$0xf]
        %v209 = vld [vmem:[%s1 + $0x1c] sm:$0xf]
        %v210 = vld [vmem:[%s1 + $0x20] sm:$0xf]
        %v211 = vld [vmem:[%s1 + $0x24] sm:$0xf]
        %v212 = vld [vmem:[%s1 + $0x28] sm:$0xf]
        %v213 = vld [vmem:[%s1 + $0x2c] sm:$0xf]
        %v214 = vld [vmem:[%s1 + $0x30] sm:$0xf]
        %v215 = vld [vmem:[%s1 + $0x34] sm:$0xf]
        %v216 = vld [vmem:[%s1 + $0x38] sm:$0xf]
        %v217 = vld [vmem:[%s1 + $0x3c] sm:$0xf]
        %v218 = vld [vmem:[%s1 + $0x40] sm:$0xf]
        %v219 = vld [vmem:[%s1 + $0x44] sm:$0xf]
        %v220 = vld [vmem:[%s1 + $0x48] sm:$0xf]
        %v221 = vld [vmem:[%s1 + $0x4c] sm:$0xf]
        %v222 = vld [vmem:[%s1 + $0x50] sm:$0xf]
        %v223 = vld [vmem:[%s1 + $0x54] sm:$0xf]
        %v224 = vld [vmem:[%s1 + $0x58] sm:$0xf]
        %v225 = vld [vmem:[%s1 + $0x5c] sm:$0xf]
        %v226 = vld [vmem:[%s1 + $0x60] sm:$0xf]
        %v227 = vld [vmem:[%s1 + $0x64] sm:$0xf]
        %v228 = vld [vmem:[%s1 + $0x68] sm:$0xf]
        %v229 = vld [vmem:[%s1 + $0x6c] sm:$0xf]
        %v230 = vld [vmem:[%s1 + $0x70] sm:$0xf]
        %v231 = vld [vmem:[%s1 + $0x74] sm:$0xf]
        %v232 = vld [vmem:[%s1 + $0x78] sm:$0xf]
        %v233 = vld [vmem:[%s1 + $0x7c] sm:$0xf]
        %v234 = vld [vmem:[%s1 + $0x80] sm:$0xf]
        %v235 = vld [vmem:[%s1 + $0x84] sm:$0xf]
        %v236 = vld [vmem:[%s1 + $0x88] sm:$0xf]
        %v237 = vld [vmem:[%s1 + $0x8c] sm:$0xf]
        %v238 = vld [vmem:[%s2] sm:$0x1]
        %v240 = vperm.slane %v238, 0
        %v244 = vunpack.c.l.b16 %v200
        %v245 = vunpack.c.h.b16 %v200
        %v246 = vunpack.c.l.b16 %v201
        %v247 = vpack.c.b16 %v244, %v244
        %v248 = vpack.c.b16 %v245, %v245
        %v249 = vpack.c.b16 %v246, %v246
        %v288 = vunpack.c.l.b16 %v202
        %v289 = vunpack.c.l.b16 %v203
        %v290 = vunpack.c.l.b16 %v204
        %v291 = vunpack.c.l.b16 %v205
        %v292 = vunpack.c.l.b16 %v206
        %v293 = vunpack.c.l.b16 %v207
        %v294 = vunpack.c.l.b16 %v208
        %v295 = vunpack.c.l.b16 %v209
        %v296 = vunpack.c.l.b16 %v210
        %v297 = vunpack.c.l.b16 %v211
        %v298 = vunpack.c.l.b16 %v212
        %v299 = vunpack.c.l.b16 %v213
        %v300 = vunpack.c.l.b16 %v214
        %v301 = vunpack.c.l.b16 %v215
        %v302 = vunpack.c.l.b16 %v216
        %v303 = vunpack.c.l.b16 %v217
        %v304 = vunpack.c.l.b16 %v218
        %v305 = vunpack.c.l.b16 %v219
        %v306 = vunpack.c.l.b16 %v220
        %v307 = vunpack.c.l.b16 %v221
        %v308 = vunpack.c.l.b16 %v222
        %v309 = vunpack.c.l.b16 %v223
        %v310 = vunpack.c.l.b16 %v224
        %v311 = vunpack.c.l.b16 %v225
        %v312 = vunpack.c.l.b16 %v226
        %v313 = vunpack.c.l.b16 %v227
        %v314 = vunpack.c.l.b16 %v228
        %v315 = vunpack.c.l.b16 %v229
        %v316 = vunpack.c.l.b16 %v230
        %v317 = vunpack.c.l.b16 %v231
        %v318 = vunpack.c.l.b16 %v232
        %v319 = vunpack.c.l.b16 %v233
        %v320 = vunpack.c.l.b16 %v234
        %v321 = vunpack.c.l.b16 %v235
        %v322 = vunpack.c.l.b16 %v236
        %v323 = vunpack.c.l.b16 %v237
        %v324 = vpack.c.b16 %v289, %v288
        %v325 = vpack.c.b16 %v291, %v290
        %v326 = vpack.c.b16 %v293, %v292
        %v327 = vpack.c.b16 %v295, %v294
        %v328 = vpack.c.b16 %v297, %v296
        %v329 = vpack.c.b16 %v299, %v298
        %v330 = vpack.c.b16 %v301, %v300
        %v331 = vpack.c.b16 %v303, %v302
        %v332 = vpack.c.b16 %v305, %v304
        %v333 = vpack.c.b16 %v307, %v306
        %v334 = vpack.c.b16 %v309, %v308
        %v335 = vpack.c.b16 %v311, %v310
        %v336 = vpack.c.b16 %v313, %v312
        %v337 = vpack.c.b16 %v315, %v314
        %v338 = vpack.c.b16 %v317, %v316
        %v339 = vpack.c.b16 %v319, %v318
        %v340 = vpack.c.b16 %v321, %v320
        %v341 = vpack.c.b16 %v323, %v322
        %vm360 = vcmask 261120
        %v362 = vsel %vm360, %v249, 0
        %364 = vmatpush.bf16.msra.mxu0 %v331
        %365 = vmatpush.bf16.msra.mxu0 %v330
        %366 = vmatpush.bf16.msra.mxu0 %v329
        %367 = vmatpush.bf16.msra.mxu0 %v328
        %368 = vmatpush.bf16.msra.mxu0 %v327
        %369 = vmatpush.bf16.msra.mxu0 %v326
        %370 = vmatpush.bf16.msra.mxu0 %v325
        %371 = vmatpush.bf16.msra.mxu0 %v324
        %372 = vmatmul.bf16.gmra.mxu0 %v247
        %v373 = vpop.f32.mrf.mxu0
        %v374 = vadd.f32 %v240, %v373
        %v375 = vpop.f32.mrf.mxu0
        %376 = vdwg.mxu0
        %377 = vmatpush.bf16.msra.mxu0 %v339
        %378 = vmatpush.bf16.msra.mxu0 %v338
        %379 = vmatpush.bf16.msra.mxu0 %v337
        %380 = vmatpush.bf16.msra.mxu0 %v336
        %381 = vmatpush.bf16.msra.mxu0 %v335
        %382 = vmatpush.bf16.msra.mxu0 %v334
        %383 = vmatpush.bf16.msra.mxu0 %v333
        %384 = vmatpush.bf16.msra.mxu0 %v332
        %385 = vmatmul.bf16.gmra.mxu0 %v248
        %v386 = vpop.f32.mrf.mxu0
        %v387 = vadd.f32 %v374, %v386
        %v388 = vpop.f32.mrf.mxu0
        %389 = vdwg.mxu0
        %390 = vmatpush.bf16.msra.mxu0 0
        %391 = vmatpush.bf16.msra.mxu0 0
        %392 = vmatpush.bf16.msra.mxu0 0
        %393 = vmatpush.bf16.msra.mxu0 0
        %394 = vmatpush.bf16.msra.mxu0 0
        %395 = vmatpush.bf16.msra.mxu0 0
        %396 = vmatpush.bf16.msra.mxu0 %v341
        %397 = vmatpush.bf16.msra.mxu0 %v340
        %398 = vmatmul.bf16.gmra.mxu0 %v362
        %v399 = vpop.f32.mrf.mxu0
        %v400 = vadd.f32 %v387, %v399
        %v401 = vpop.f32.mrf.mxu0
        %402 = vdwg.mxu0
        %v403 = vmax.f32 %v400, 0.0
        %s404 = smul.u32 %s22, 8
        %v405 = vlaneseq
        %v406 = vshrl.u32 %v405, 7
        %v407 = vstv %s404
        %v408 = vadd.s32 %v407, %v406
        %vm409 = vcmp.lt.s32.totalorder %v408, 4
        %v410 = vsel %vm409, 1, 0
        %vm411 = vcmp.eq.s32.totalorder %v410, 1
        %v412 = vsel %vm411, %v403, 0.0
        %v413 = vld [vmem:[%s184] sm:$0x1]
        %v414 = vrot.slane %v412, 4
        %v415 = vadd.f32 %v412, %v414
        %v416 = vrot.slane %v415, 2
        %v417 = vadd.f32 %v415, %v416
        %v418 = vrot.slane %v417, 1
        %v419 = vadd.f32 %v417, %v418
        %v420 = vadd.f32 %v413, %v419
        %421 = vst [vmem:[%s184] sm:$0x1] %v420
        // Predicated region
        $region37: #{style_encoder_nocond.5} parent=31 // pred_check
          %p422 = pneg %p195
        $region38: #{style_encoder_nocond.5} parent=31 // pred_check_branch
          %424 = sbr.rel (%p422) target = $region40
        $region39: #{style_encoder_nocond.5} parent=31 // pred_region
          %v425 = vld [vmem:[%s184] sm:$0x1]
          %v426 = vmul.f32 %v425, 0.25
          %427 = vst [vmem:[%s184] sm:$0x1] %v426
        $region40: #{style_encoder_nocond.5} parent=31 // pred_fallthru
          _
        %s428 = sand.u32 %s107, 1
        %s429 = scalar_lea.sflag [#allocation3], %s428
        %s430 = sand.u32 %s107, 1
        %s431 = scalar_lea.vmem [#allocation2], %s430
        // Predicated region
        $region41: #{style_encoder_nocond.5} parent=31 // pred_check
          %p432 = pneg %p117
        $region42: #{style_encoder_nocond.5} parent=31 // pred_check_branch
          %434 = sbr.rel (%p432) target = $region44
        $region43: #{style_encoder_nocond.5} parent=31 // pred_region
          %436 = vsyncadd %s429, 0
          %s437 = scalar_lea.hbm %s3, %s21
          %s439 = sshll.u32 %s431, 4
          %s440 = int_to_ptr.vmem [resolvable:$true] %s439
          %s441 = sshll.u32 %s437, 4
          %s442 = int_to_ptr.hbm [resolvable:$true] %s441
          %444 = dma.vmem_to_hbm [thread:$0]  %s440, 16, %s442, %s429
        $region44: #{style_encoder_nocond.5} parent=31 // pred_fallthru
          _
      $region32: #{style_encoder_nocond.5} parent=5 // pred_fallthru
        _
      %p445 = scmp.le.s32.totalorder 2, %s12
      // Predicated region
      $region45: #{style_encoder_nocond.5} parent=5 // pred_check
        %p446 = pneg %p445
      $region46: #{style_encoder_nocond.5} parent=5 // pred_check_branch
        %448 = sbr.rel (%p446) target = $region48
      $region47: #{style_encoder_nocond.5} parent=5 // pred_region
        %s449 = ssub.s32 %s12, 2
        // Predicated region
        $region49: #{style_encoder_nocond.5} parent=47 // pred_check
          %p450 = pneg %p123
        $region50: #{style_encoder_nocond.5} parent=47 // pred_check_branch
          %452 = sbr.rel (%p450) target = $region52
        $region51: #{style_encoder_nocond.5} parent=47 // pred_region
          %s453 = sand.u32 %s108, 1
          %s454 = scalar_lea.sflag [#allocation3], %s453
          %s455 = sand.u32 %s108, 1
          %s456 = scalar_lea.vmem [#allocation2], %s455
          %458 = dma.done %s454, 16
        $region52: #{style_encoder_nocond.5} parent=47 // pred_fallthru
          _
      $region48: #{style_encoder_nocond.5} parent=5 // pred_fallthru
        _
    $region6: #{style_encoder_nocond.5} parent=1 // loop_footer
      %s16 = sadd.s32 1, %s12
    $region7: #{style_encoder_nocond.5} parent=1 // loop_footer_branch
      %11 = sbr.rel target = $region3
    $region8: #{style_encoder_nocond.5} parent=1 // loop_exit
      _
    %459 = vsyncpa [#allocation3], 1
    %s460 = scalar_lea.sflag [#allocation3], 1
    %461 = vsyncpa %s460, 1

</llo_original>
